<compile_context>
chip_gen: v7x
topology: tpu7x:2x2x1
jax: 0.10.0
libtpu: 0.0.40
codegen_flags: <defaults>
</compile_context>

<pallas_src>
import jax
import jax.numpy as jnp
from jax.experimental import pallas as pl
from jax.experimental.pallas import tpu as pltpu


def critic_kernel(x_ref, w1_ref, b1_ref, w2_ref, b2_ref, w3_ref, b3_ref, out_ref):
    # Cast the streamed f32 activation tile to bf16 on the VPU (hides under the MXU slot).
    x = x_ref[...].astype(jnp.bfloat16)
    # Layers 1 & 2: bf16 MXU matmuls, f32 accumulation; f32 bias-add + ReLU on the VPU.
    h1 = jnp.dot(x, w1_ref[...], preferred_element_type=jnp.float32)
    h1 = jnp.maximum(h1 + b1_ref[...], 0.0)
    h2 = jnp.dot(h1.astype(jnp.bfloat16), w2_ref[...], preferred_element_type=jnp.float32)
    h2 = jnp.maximum(h2 + b2_ref[...], 0.0)
    # Value head (fc2 -> 1): contract the f32 w3 row against h2's feature axis (NT matmul),
    # so the result is emitted lane-dense as (1, tile_b): one unmasked vst + contiguous DMA.
    v = jax.lax.dot_general(
        w3_ref[...], h2,
        dimension_numbers=(((1,), (1,)), ((), ())),
        preferred_element_type=jnp.float32)
    out_ref[...] = (v + b3_ref[0, 0]).astype(out_ref.dtype)


def _round_up(x, m):
    return ((x + m - 1) // m) * m


def _choose_tiling(batch):
    """Return (tile_b, padded_batch) for the batch grid."""
    if batch <= 256:
        # One grid step covering the real batch: every block dim equals the array dim, so the
        # (8,128) divisibility rule is satisfied with zero padding and zero wrapper pad ops.
        return batch, batch
    if batch <= 1024:
        # Two even, lane-aligned (multiple-of-128) tiles: both v7x TensorCores get work and
        # the (1, tile_b) output block stays a full, unmasked lane group.
        tile_b = _round_up((batch + 1) // 2, 128)
        return tile_b, 2 * tile_b
    # Very large batches: 512-row tiles (v6e/v5e sweet spot; VMEM footprint is still < 1 MiB).
    tile_b = 512
    return tile_b, _round_up(batch, tile_b)


def prepare_critic_params(w1, b1, w2, b2, w3, b3):
    """One-time (init-time) conversion of parameters to the kernel's layouts / dtypes.

    Weights are expected in (in_features, out_features) layout.  Doing the casts / reshapes
    here keeps them out of the per-call path (each wrapper-side cast/pad would be a separate
    XLA op with its own HBM round trip, which dominated the cost at small batch sizes).
    """
    return dict(
        w1=jnp.asarray(w1, jnp.bfloat16),                  # (d_in, fc1)  MXU operand
        b1=jnp.asarray(b1, jnp.float32).reshape(1, -1),    # (1, fc1)     f32 epilogue
        w2=jnp.asarray(w2, jnp.bfloat16),                  # (fc1, fc2)   MXU operand
        b2=jnp.asarray(b2, jnp.float32).reshape(1, -1),    # (1, fc2)
        w3=jnp.asarray(w3, jnp.float32).reshape(1, -1),    # (1, fc2)     f32 head row
        b3=jnp.asarray(b3, jnp.float32).reshape(1, 1),     # (1, 1)       SMEM scalar
    )


@jax.jit
def critic_forward(state, params):
    """value = critic(state).  state: (B, d_in) float32 -> (B, 1) float32."""
    B, d_in = state.shape
    fc1 = params["w1"].shape[1]
    fc2 = params["w2"].shape[1]
    tile_b, b_pad = _choose_tiling(B)
    n_tiles = b_pad // tile_b

    # Only wrapper op on the activation path, and only when batch tiling actually requires it.
    x = state if b_pad == B else jnp.pad(state, ((0, b_pad - B), (0, 0)))

    out = pl.pallas_call(
        critic_kernel,
        out_shape=jax.ShapeDtypeStruct((1, b_pad), jnp.float32),
        grid=(n_tiles,),
        in_specs=[
            pl.BlockSpec((tile_b, d_in), lambda i: (i, 0)),    # x: streamed per batch tile
            pl.BlockSpec((d_in, fc1), lambda i: (0, 0)),       # W1: VMEM-resident
            pl.BlockSpec((1, fc1), lambda i: (0, 0)),          # b1
            pl.BlockSpec((fc1, fc2), lambda i: (0, 0)),        # W2: VMEM-resident
            pl.BlockSpec((1, fc2), lambda i: (0, 0)),          # b2
            pl.BlockSpec((1, fc2), lambda i: (0, 0)),          # w3 row
            pl.BlockSpec((1, 1), lambda i: (0, 0),
                         memory_space=pltpu.MemorySpace.SMEM),  # b3 scalar
        ],
        out_specs=pl.BlockSpec((1, tile_b), lambda i: (0, i)),  # lane-dense value row
        compiler_params=pltpu.CompilerParams(
            dimension_semantics=("parallel",)),
    )(x, params["w1"], params["b1"], params["w2"], params["b2"],
      params["w3"], params["b3"])

    return out[0, :B].reshape(B, 1)


def init_linear(key, fan_in, fan_out):
    # PyTorch nn.Linear default init: U(-1/sqrt(fan_in), 1/sqrt(fan_in)); weight in (in, out).
    kw, kb = jax.random.split(key)
    bound = 1.0 / jnp.sqrt(jnp.float32(fan_in))
    w = jax.random.uniform(kw, (fan_in, fan_out), jnp.float32, -bound, bound)
    b = jax.random.uniform(kb, (fan_out,), jnp.float32, -bound, bound)
    return w, b


def reference_forward(state, w1, b1, w2, b2, w3, b3):
    # Pure-JAX reference in the same mixed precision (bf16 matmul inputs, f32 accum/epilogue).
    h1 = jnp.maximum(
        jnp.dot(state.astype(jnp.bfloat16), w1.astype(jnp.bfloat16),
                preferred_element_type=jnp.float32) + b1.reshape(1, -1), 0.0)
    h2 = jnp.maximum(
        jnp.dot(h1.astype(jnp.bfloat16), w2.astype(jnp.bfloat16),
                preferred_element_type=jnp.float32) + b2.reshape(1, -1), 0.0)
    return jnp.dot(h2, w3.reshape(-1, 1),
                   preferred_element_type=jnp.float32) + b3.reshape(1, 1)


if __name__ == "__main__":
    # Shapes consistent with the module: input_dims=(32,), fc1_dims=fc2_dims=256.
    D_IN, FC1, FC2 = 32, 256, 256

    key = jax.random.PRNGKey(0)
    k1, k2, k3, kx1, kx2 = jax.random.split(key, 5)

    w1, b1 = init_linear(k1, D_IN, FC1)
    w2, b2 = init_linear(k2, FC1, FC2)
    w3, b3 = init_linear(k3, FC2, 1)
    params = prepare_critic_params(w1, b1, w2, b2, w3, b3)   # one-time, at "init"

    ok = True
    # B=8: tiny-batch path (single tile == real batch, zero padding / wrapper ops).
    # B=300: tiled path (two 256-row lane-aligned tiles, padded batch, v7x-parallel grid).
    for kx, B in ((kx1, 8), (kx2, 300)):
        state = jax.random.normal(kx, (B, D_IN), jnp.float32)
        value = jax.block_until_ready(critic_forward(state, params))
        assert value.shape == (B, 1)
        ref = reference_forward(state, w1, b1, w2, b2, w3, b3)
        ok = ok and bool(jnp.allclose(value, ref, atol=1e-3, rtol=1e-3))
    assert ok, "mismatch vs reference"
    print("KERNEL_OK")
</pallas_src>

<mosaic_0001>
module attributes {stable_mosaic.version = 11 : i64} {
  func.func @critic_kernel(%arg0: i32, %arg1: memref<8x32xf32, #tpu.memory_space<vmem>>, %arg2: memref<32x256xbf16, #tpu.memory_space<vmem>>, %arg3: memref<1x256xf32, #tpu.memory_space<vmem>>, %arg4: memref<256x256xbf16, #tpu.memory_space<vmem>>, %arg5: memref<1x256xf32, #tpu.memory_space<vmem>>, %arg6: memref<1x256xf32, #tpu.memory_space<vmem>>, %arg7: memref<1x1xf32, #tpu.memory_space<smem>>, %arg8: memref<1x8xf32, #tpu.memory_space<vmem>>) attributes {dimension_semantics = [#tpu.dimension_semantics<parallel>], iteration_bounds = array<i64: 1>, scalar_prefetch = 0 : i64, scratch_operands = 0 : i64, tpu.core_type = #tpu.core_type<tc>, window_params = [{transform_indices = @transform_0, window_bounds = array<i64: 8, 32>}, {pipeline_mode = #tpu.pipeline_mode<synchronous>, transform_indices = @transform_1, window_bounds = array<i64: 32, 256>}, {pipeline_mode = #tpu.pipeline_mode<synchronous>, transform_indices = @transform_2, window_bounds = array<i64: 1, 256>}, {pipeline_mode = #tpu.pipeline_mode<synchronous>, transform_indices = @transform_3, window_bounds = array<i64: 256, 256>}, {pipeline_mode = #tpu.pipeline_mode<synchronous>, transform_indices = @transform_4, window_bounds = array<i64: 1, 256>}, {pipeline_mode = #tpu.pipeline_mode<synchronous>, transform_indices = @transform_5, window_bounds = array<i64: 1, 256>}, {transform_indices = @transform_6, window_bounds = array<i64: 1, 1>}, {transform_indices = @transform_7, window_bounds = array<i64: 1, 8>}]} {
    %c0 = arith.constant 0 : index
    %c0_0 = arith.constant 0 : index
    %0 = vector.load %arg1[%c0, %c0_0] : memref<8x32xf32, #tpu.memory_space<vmem>>, vector<8x32xf32>
    %1 = arith.truncf %0 : vector<8x32xf32> to vector<8x32xbf16>
    %c0_1 = arith.constant 0 : index
    %c0_2 = arith.constant 0 : index
    %2 = vector.load %arg2[%c0_1, %c0_2] : memref<32x256xbf16, #tpu.memory_space<vmem>>, vector<32x256xbf16>
    %cst = arith.constant dense<0.000000e+00> : vector<8x256xf32>
    %3 = tpu.matmul %1, %2, %cst {dimension_numbers = #tpu.dot_dimension_numbers<[1], [0], [0], [1], [0, 0, 1, 1], [], []>} : vector<8x32xbf16>, vector<32x256xbf16>, vector<8x256xf32> -> vector<8x256xf32>
    %c0_3 = arith.constant 0 : index
    %c0_4 = arith.constant 0 : index
    %4 = vector.load %arg3[%c0_3, %c0_4] : memref<1x256xf32, #tpu.memory_space<vmem>>, vector<1x256xf32>
    %5 = vector.broadcast %4 : vector<1x256xf32> to vector<8x256xf32>
    %6 = arith.addf %3, %5 : vector<8x256xf32>
    %cst_5 = arith.constant 0.000000e+00 : f32
    %7 = vector.broadcast %cst_5 : f32 to vector<8x256xf32>
    %8 = arith.maximumf %6, %7 : vector<8x256xf32>
    %9 = arith.truncf %8 : vector<8x256xf32> to vector<8x256xbf16>
    %c0_6 = arith.constant 0 : index
    %c0_7 = arith.constant 0 : index
    %10 = vector.load %arg4[%c0_6, %c0_7] : memref<256x256xbf16, #tpu.memory_space<vmem>>, vector<256x256xbf16>
    %cst_8 = arith.constant dense<0.000000e+00> : vector<8x256xf32>
    %11 = tpu.matmul %9, %10, %cst_8 {dimension_numbers = #tpu.dot_dimension_numbers<[1], [0], [0], [1], [0, 0, 1, 1], [], []>} : vector<8x256xbf16>, vector<256x256xbf16>, vector<8x256xf32> -> vector<8x256xf32>
    %c0_9 = arith.constant 0 : index
    %c0_10 = arith.constant 0 : index
    %12 = vector.load %arg5[%c0_9, %c0_10] : memref<1x256xf32, #tpu.memory_space<vmem>>, vector<1x256xf32>
    %13 = vector.broadcast %12 : vector<1x256xf32> to vector<8x256xf32>
    %14 = arith.addf %11, %13 : vector<8x256xf32>
    %cst_11 = arith.constant 0.000000e+00 : f32
    %15 = vector.broadcast %cst_11 : f32 to vector<8x256xf32>
    %16 = arith.maximumf %14, %15 : vector<8x256xf32>
    %c0_12 = arith.constant 0 : index
    %c0_13 = arith.constant 0 : index
    %17 = vector.load %arg6[%c0_12, %c0_13] : memref<1x256xf32, #tpu.memory_space<vmem>>, vector<1x256xf32>
    %cst_14 = arith.constant dense<0.000000e+00> : vector<1x8xf32>
    %18 = tpu.matmul %17, %16, %cst_14 {dimension_numbers = #tpu.dot_dimension_numbers<[1], [1], [0], [0], [0, 0, 1, 0], [], []>} : vector<1x256xf32>, vector<8x256xf32>, vector<1x8xf32> -> vector<1x8xf32>
    %c0_15 = arith.constant 0 : index
    %c0_16 = arith.constant 0 : index
    %19 = memref.load %arg7[%c0_15, %c0_16] : memref<1x1xf32, #tpu.memory_space<smem>>
    %20 = vector.broadcast %19 : f32 to vector<1x8xf32>
    %21 = arith.addf %18, %20 : vector<1x8xf32>
    %c0_17 = arith.constant 0 : index
    %c0_18 = arith.constant 0 : index
    %22 = vector.load %arg8[%c0_17, %c0_18] : memref<1x8xf32, #tpu.memory_space<vmem>>, vector<1x8xf32>
    tpu.vector_store %arg8[%c0_17, %c0_18], %21 {strides = array<i32>} : memref<1x8xf32, #tpu.memory_space<vmem>>, vector<1x8xf32>,
    return
  }
  func.func @transform_0(%arg0: i32) -> (i32, i32) {
    %c0_i32 = arith.constant 0 : i32
    %c0_i32_0 = arith.constant 0 : i32
    return %arg0, %c0_i32 : i32, i32
  }
  func.func @transform_1(%arg0: i32) -> (i32, i32) {
    %c0_i32 = arith.constant 0 : i32
    %c0_i32_0 = arith.constant 0 : i32
    %c0_i32_1 = arith.constant 0 : i32
    return %c0_i32, %c0_i32_0 : i32, i32
  }
  func.func @transform_2(%arg0: i32) -> (i32, i32) {
    %c0_i32 = arith.constant 0 : i32
    %c0_i32_0 = arith.constant 0 : i32
    %c0_i32_1 = arith.constant 0 : i32
    return %c0_i32, %c0_i32_0 : i32, i32
  }
  func.func @transform_3(%arg0: i32) -> (i32, i32) {
    %c0_i32 = arith.constant 0 : i32
    %c0_i32_0 = arith.constant 0 : i32
    %c0_i32_1 = arith.constant 0 : i32
    return %c0_i32, %c0_i32_0 : i32, i32
  }
  func.func @transform_4(%arg0: i32) -> (i32, i32) {
    %c0_i32 = arith.constant 0 : i32
    %c0_i32_0 = arith.constant 0 : i32
    %c0_i32_1 = arith.constant 0 : i32
    return %c0_i32, %c0_i32_0 : i32, i32
  }
  func.func @transform_5(%arg0: i32) -> (i32, i32) {
    %c0_i32 = arith.constant 0 : i32
    %c0_i32_0 = arith.constant 0 : i32
    %c0_i32_1 = arith.constant 0 : i32
    return %c0_i32, %c0_i32_0 : i32, i32
  }
  func.func @transform_6(%arg0: i32) -> (i32, i32) {
    %c0_i32 = arith.constant 0 : i32
    %c0_i32_0 = arith.constant 0 : i32
    %c0_i32_1 = arith.constant 0 : i32
    return %c0_i32, %c0_i32_0 : i32, i32
  }
  func.func @transform_7(%arg0: i32) -> (i32, i32) {
    %c0_i32 = arith.constant 0 : i32
    %c0_i32_0 = arith.constant 0 : i32
    return %c0_i32, %arg0 : i32, i32
  }
}

</mosaic_0001>

<llo_original>
// kernel: critic_forward.1
$region0: #{critic_forward.1}
  #allocation0 [shape = 'u32[]', space=smem, size = 0x4, offset = 0x4, fixed_abs, tag = 'smem constant byte address 0x4 - core index']
  #allocation1 [shape = 'u32[144,128]{1,0:T(1,128)}', space=vmem, size = 0x12000, scoped, tag = 'internal scratch']
  #allocation2 [shape = 'f32[1,1]{1,0:T(1,128)S(6)}', space=smem, size = 0x200, scoped, tag = 'scoped memory for critic_forward.1']
  %s0 = inlined_call_operand.hbm [shape: f32[8,32], index: 0, kind: input, shape index: {}]
  %s1 = inlined_call_operand.hbm [shape: bf16[32,256], index: 1, kind: input, shape index: {}]
  %s2 = inlined_call_operand.vmem [shape: f32[1,256], index: 2, kind: input, shape index: {}]
  %s3 = inlined_call_operand.hbm [shape: bf16[256,256], index: 3, kind: input, shape index: {}]
  %s4 = inlined_call_operand.vmem [shape: f32[1,256], index: 4, kind: input, shape index: {}]
  %s5 = inlined_call_operand.vmem [shape: f32[1,256], index: 5, kind: input, shape index: {}]
  %s6 = inlined_call_operand.<no memory space> [shape: f32[1,1], index: 6, kind: input, shape index: {}]
  %s7 = inlined_call_operand.hbm [shape: f32[1,8], index: 7, kind: output, shape index: {}]
  %s8 = sld [smem:[#allocation0]]
  $region50: #{critic_forward.1} parent=0
    _
  %s10 = ssub.s32 1, %s8
  %s11 = scalar_select 0, %s10, %s8
  %12 = sst [smem:[#allocation2]] %s6
  $region1: #{critic_forward.1} parent=0
    #allocation3 [shape = 'u8[4096]{0}', space=vmem, size = 0x1000, scoped, tag = 'input window, operand 0, single buffered']
    #allocation4 [shape = 's32[1]{0}', space=sflag, size = 0x4, scoped, tag = 'scoped memory for critic_forward.1']
    #allocation5 [shape = 's32[1]{0}', space=sflag, size = 0x4, scoped, tag = 'scoped memory for critic_forward.1']
    #allocation6 [shape = 'u8[16384]{0}', space=vmem, size = 0x4000, scoped, tag = 'input window, operand 1, single buffered']
    #allocation7 [shape = 's32[1]{0}', space=sflag, size = 0x4, scoped, tag = 'scoped memory for critic_forward.1']
    #allocation8 [shape = 'u8[131072]{0}', space=vmem, size = 0x20000, scoped, tag = 'input window, operand 3, single buffered']
    #allocation9 [shape = 'u8[512]{0}', space=vmem, size = 0x400, scoped, tag = 'output window, operand 0, single buffered']
    %13 = vsyncpa [#allocation4], 0
    %14 = vsyncpa [#allocation7], 0
    %15 = vsyncpa [#allocation5], 0
    // Predicated region
    $region2: #{critic_forward.1} parent=1 // pred_check
      _
    $region3: #{critic_forward.1} parent=1 // pred_check_branch
      %17 = sbr.rel (0) target = $region5
    $region4: #{critic_forward.1} parent=1 // pred_region
      %s19 = ssub.s32 128, 128
      %20 = vsyncadd [#allocation4], %s19
      %s22 = sshll.u32 [#allocation3], 4
      %s23 = int_to_ptr.vmem [resolvable:$true] %s22
      %25 = dma.hbm_to_vmem [thread:$0]  %s0, 128, %s23, [#allocation4]
    $region5: #{critic_forward.1} parent=1 // pred_fallthru
      _
    // Predicated region
    $region6: #{critic_forward.1} parent=1 // pred_check
      _
    $region7: #{critic_forward.1} parent=1 // pred_check_branch
      %27 = sbr.rel (0) target = $region9
    $region8: #{critic_forward.1} parent=1 // pred_region
      %s29 = ssub.s32 512, 512
      %30 = vsyncadd [#allocation7], %s29
      %s31 = sshll.u32 [#allocation6], 4
      %s32 = int_to_ptr.vmem [resolvable:$true] %s31
      %37 = dma.hbm_to_vmem [thread:$0]  %s1, 512, %s32, [#allocation7], 128, 128, 8
    $region9: #{critic_forward.1} parent=1 // pred_fallthru
      _
    // Predicated region
    $region10: #{critic_forward.1} parent=1 // pred_check
      _
    $region11: #{critic_forward.1} parent=1 // pred_check_branch
      %39 = sbr.rel (0) target = $region13
    $region12: #{critic_forward.1} parent=1 // pred_region
      _
    $region13: #{critic_forward.1} parent=1 // pred_fallthru
      _
    // Predicated region
    $region14: #{critic_forward.1} parent=1 // pred_check
      _
    $region15: #{critic_forward.1} parent=1 // pred_check_branch
      %41 = sbr.rel (0) target = $region17
    $region16: #{critic_forward.1} parent=1 // pred_region
      %s43 = ssub.s32 4096, 4096
      %44 = vsyncadd [#allocation7], %s43
      %s45 = sshll.u32 [#allocation8], 4
      %s46 = int_to_ptr.vmem [resolvable:$true] %s45
      %51 = dma.hbm_to_vmem [thread:$0]  %s3, 4096, %s46, [#allocation7], 128, 128, 8
    $region17: #{critic_forward.1} parent=1 // pred_fallthru
      _
    // Predicated region
    $region18: #{critic_forward.1} parent=1 // pred_check
      _
    $region19: #{critic_forward.1} parent=1 // pred_check_branch
      %53 = sbr.rel (0) target = $region21
    $region20: #{critic_forward.1} parent=1 // pred_region
      _
    $region21: #{critic_forward.1} parent=1 // pred_fallthru
      _
    // Predicated region
    $region22: #{critic_forward.1} parent=1 // pred_check
      _
    $region23: #{critic_forward.1} parent=1 // pred_check_branch
      %55 = sbr.rel (0) target = $region25
    $region24: #{critic_forward.1} parent=1 // pred_region
      _
    $region25: #{critic_forward.1} parent=1 // pred_fallthru
      _
    // Predicated region
    $region26: #{critic_forward.1} parent=1 // pred_check
      _
    $region27: #{critic_forward.1} parent=1 // pred_check_branch
      %57 = sbr.rel (0) target = $region29
    $region28: #{critic_forward.1} parent=1 // pred_region
      _
    $region29: #{critic_forward.1} parent=1 // pred_fallthru
      _
    // Predicated region
    $region30: #{critic_forward.1} parent=1 // pred_check
      _
    $region31: #{critic_forward.1} parent=1 // pred_check_branch
      %59 = sbr.rel (0) target = $region33
    $region32: #{critic_forward.1} parent=1 // pred_region
      %60 = dma.done [#allocation4], 128
    $region33: #{critic_forward.1} parent=1 // pred_fallthru
      _
    // Predicated region
    $region34: #{critic_forward.1} parent=1 // pred_check
      _
    $region35: #{critic_forward.1} parent=1 // pred_check_branch
      %62 = sbr.rel (0) target = $region37
    $region36: #{critic_forward.1} parent=1 // pred_region
      %63 = dma.done [#allocation7], 512
    $region37: #{critic_forward.1} parent=1 // pred_fallthru
      _
    // Predicated region
    $region38: #{critic_forward.1} parent=1 // pred_check
      _
    $region39: #{critic_forward.1} parent=1 // pred_check_branch
      %65 = sbr.rel (0) target = $region41
    $region40: #{critic_forward.1} parent=1 // pred_region
      %66 = dma.done [#allocation7], 4096
    $region41: #{critic_forward.1} parent=1 // pred_fallthru
      _
    %v68 = vld [vmem:[#allocation3] sm:$0xff]
    %v69 = vpack.c.bf16 %v68, %v68
    %v70 = vld [vmem:[#allocation6] sm:$0xff]
    %v71 = vld [vmem:[#allocation6 + $0x8] sm:$0xff]
    %v72 = vld [vmem:[#allocation6 + $0x10] sm:$0xff]
    %v73 = vld [vmem:[#allocation6 + $0x18] sm:$0xff]
    %v74 = vld [vmem:[%s2] sm:$0x3]
    %v76 = vlaneseq
    %v77 = vshrl.u32 %v76, 7
    %v78 = vsub.s32 0, %v77
    %v79 = vrot.slane %v74, %v78
    %v80 = vlaneseq
    %v81 = vshrl.u32 %v80, 7
    %v82 = vsub.s32 1, %v81
    %v83 = vrot.slane %v74, %v82
    %v90 = vunpack.c.l.b16 %v70
    %v91 = vunpack.c.h.b16 %v70
    %v92 = vunpack.c.l.b16 %v71
    %v93 = vunpack.c.h.b16 %v71
    %v94 = vunpack.c.l.b16 %v72
    %v95 = vunpack.c.h.b16 %v72
    %v96 = vunpack.c.l.b16 %v73
    %v97 = vunpack.c.h.b16 %v73
    %v98 = vpack.c.b16 %v92, %v90
    %v99 = vpack.c.b16 %v93, %v91
    %v100 = vpack.c.b16 %v96, %v94
    %v101 = vpack.c.b16 %v97, %v95
    %vm106 = vcmask 261120
    %v108 = vsel %vm106, %v69, 0
    %110 = vmatprep.subr.bf16.mxu0 %v99
    %111 = vmatpush1.bf16.msra.mxu0 %v98
    %112 = vmatprep.subr.bf16.mxu0 %v101
    %113 = vmatpush1.bf16.msra.mxu0 %v100
    %114 = vmatprep.subr.bf16.mxu0 0
    %115 = vmatpush1.bf16.msra.mxu0 0
    %116 = vmatprep.subr.bf16.mxu0 0
    %117 = vmatpush1.bf16.msra.mxu0 0
    %118 = vmatprep.subr.bf16.mxu0 0
    %119 = vmatpush1.bf16.msra.mxu0 0
    %120 = vmatprep.subr.bf16.mxu0 0
    %121 = vmatpush1.bf16.msra.mxu0 0
    %122 = vmatprep.subr.bf16.mxu0 0
    %123 = vmatpush1.bf16.msra.mxu0 0
    %124 = vmatprep.subr.bf16.mxu0 0
    %125 = vmatpush1.bf16.msra.mxu0 0
    %126 = vmatprep.subr.bf16.mxu0 0
    %127 = vmatpush1.bf16.msra.mxu0 0
    %128 = vmatprep.subr.bf16.mxu0 0
    %129 = vmatpush1.bf16.msra.mxu0 0
    %130 = vmatprep.subr.bf16.mxu0 0
    %131 = vmatpush1.bf16.msra.mxu0 0
    %132 = vmatprep.subr.bf16.mxu0 0
    %133 = vmatpush1.bf16.msra.mxu0 0
    %134 = vmatprep.subr.bf16.mxu0 0
    %135 = vmatpush1.bf16.msra.mxu0 0
    %136 = vmatprep.subr.bf16.mxu0 0
    %137 = vmatpush1.bf16.msra.mxu0 0
    %138 = vmatprep.subr.bf16.mxu0 0
    %139 = vmatpush1.bf16.msra.mxu0 0
    %140 = vmatprep.subr.bf16.mxu0 0
    %141 = vmatpush1.bf16.msra.mxu0 0
    %142 = vmatprep.mubr.bf16.mxu0 0
    %143 = vmatmul.mubr.bf16.gmra.mrb[0].mxu0 %v108
    %v144 = vpop.f32.mrb[0].mxu0
    %v145 = vadd.f32 %v79, %v144
    %v146 = vpop.f32.mrb[0].mxu0
    %v147 = vadd.f32 %v83, %v146
    %v148 = vpop.f32.mrb[0].mxu0
    %v149 = vpop.f32.mrb[0].mxu0
    %150 = vdwg.mxu0
    %v151 = vmax.f32 %v145, 0.0
    %v152 = vmax.f32 %v147, 0.0
    %v153 = vpack.c.bf16 %v151, %v151
    %v154 = vpack.c.bf16 %v152, %v152
    %v155 = vld [vmem:[#allocation8] sm:$0xff]
    %v156 = vld [vmem:[#allocation8 + $0x8] sm:$0xff]
    %v157 = vld [vmem:[#allocation8 + $0x10] sm:$0xff]
    %v158 = vld [vmem:[#allocation8 + $0x18] sm:$0xff]
    %v159 = vld [vmem:[#allocation8 + $0x20] sm:$0xff]
    %v160 = vld [vmem:[#allocation8 + $0x28] sm:$0xff]
    %v161 = vld [vmem:[#allocation8 + $0x30] sm:$0xff]
    %v162 = vld [vmem:[#allocation8 + $0x38] sm:$0xff]
    %v163 = vld [vmem:[#allocation8 + $0x40] sm:$0xff]
    %v164 = vld [vmem:[#allocation8 + $0x48] sm:$0xff]
    %v165 = vld [vmem:[#allocation8 + $0x50] sm:$0xff]
    %v166 = vld [vmem:[#allocation8 + $0x58] sm:$0xff]
    %v167 = vld [vmem:[#allocation8 + $0x60] sm:$0xff]
    %v168 = vld [vmem:[#allocation8 + $0x68] sm:$0xff]
    %v169 = vld [vmem:[#allocation8 + $0x70] sm:$0xff]
    %v170 = vld [vmem:[#allocation8 + $0x78] sm:$0xff]
    %v171 = vld [vmem:[#allocation8 + $0x80] sm:$0xff]
    %v172 = vld [vmem:[#allocation8 + $0x88] sm:$0xff]
    %v173 = vld [vmem:[#allocation8 + $0x90] sm:$0xff]
    %v174 = vld [vmem:[#allocation8 + $0x98] sm:$0xff]
    %v175 = vld [vmem:[#allocation8 + $0xa0] sm:$0xff]
    %v176 = vld [vmem:[#allocation8 + $0xa8] sm:$0xff]
    %v177 = vld [vmem:[#allocation8 + $0xb0] sm:$0xff]
    %v178 = vld [vmem:[#allocation8 + $0xb8] sm:$0xff]
    %v179 = vld [vmem:[#allocation8 + $0xc0] sm:$0xff]
    %v180 = vld [vmem:[#allocation8 + $0xc8] sm:$0xff]
    %v181 = vld [vmem:[#allocation8 + $0xd0] sm:$0xff]
    %v182 = vld [vmem:[#allocation8 + $0xd8] sm:$0xff]
    %v183 = vld [vmem:[#allocation8 + $0xe0] sm:$0xff]
    %v184 = vld [vmem:[#allocation8 + $0xe8] sm:$0xff]
    %v185 = vld [vmem:[#allocation8 + $0xf0] sm:$0xff]
    %v186 = vld [vmem:[#allocation8 + $0xf8] sm:$0xff]
    %v187 = vld [vmem:[%s4] sm:$0x3]
    %v189 = vlaneseq
    %v190 = vshrl.u32 %v189, 7
    %v191 = vsub.s32 0, %v190
    %v192 = vrot.slane %v187, %v191
    %v193 = vlaneseq
    %v194 = vshrl.u32 %v193, 7
    %v195 = vsub.s32 1, %v194
    %v196 = vrot.slane %v187, %v195
    %v231 = vunpack.c.l.b16 %v155
    %v232 = vunpack.c.h.b16 %v155
    %v233 = vunpack.c.l.b16 %v156
    %v234 = vunpack.c.h.b16 %v156
    %v235 = vunpack.c.l.b16 %v157
    %v236 = vunpack.c.h.b16 %v157
    %v237 = vunpack.c.l.b16 %v158
    %v238 = vunpack.c.h.b16 %v158
    %v239 = vunpack.c.l.b16 %v159
    %v240 = vunpack.c.h.b16 %v159
    %v241 = vunpack.c.l.b16 %v160
    %v242 = vunpack.c.h.b16 %v160
    %v243 = vunpack.c.l.b16 %v161
    %v244 = vunpack.c.h.b16 %v161
    %v245 = vunpack.c.l.b16 %v162
    %v246 = vunpack.c.h.b16 %v162
    %v247 = vunpack.c.l.b16 %v163
    %v248 = vunpack.c.h.b16 %v163
    %v249 = vunpack.c.l.b16 %v164
    %v250 = vunpack.c.h.b16 %v164
    %v251 = vunpack.c.l.b16 %v165
    %v252 = vunpack.c.h.b16 %v165
    %v253 = vunpack.c.l.b16 %v166
    %v254 = vunpack.c.h.b16 %v166
    %v255 = vunpack.c.l.b16 %v167
    %v256 = vunpack.c.h.b16 %v167
    %v257 = vunpack.c.l.b16 %v168
    %v258 = vunpack.c.h.b16 %v168
    %v259 = vunpack.c.l.b16 %v169
    %v260 = vunpack.c.h.b16 %v169
    %v261 = vunpack.c.l.b16 %v170
    %v262 = vunpack.c.h.b16 %v170
    %v263 = vunpack.c.l.b16 %v171
    %v264 = vunpack.c.h.b16 %v171
    %v265 = vunpack.c.l.b16 %v172
    %v266 = vunpack.c.h.b16 %v172
    %v267 = vunpack.c.l.b16 %v173
    %v268 = vunpack.c.h.b16 %v173
    %v269 = vunpack.c.l.b16 %v174
    %v270 = vunpack.c.h.b16 %v174
    %v271 = vunpack.c.l.b16 %v175
    %v272 = vunpack.c.h.b16 %v175
    %v273 = vunpack.c.l.b16 %v176
    %v274 = vunpack.c.h.b16 %v176
    %v275 = vunpack.c.l.b16 %v177
    %v276 = vunpack.c.h.b16 %v177
    %v277 = vunpack.c.l.b16 %v178
    %v278 = vunpack.c.h.b16 %v178
    %v279 = vunpack.c.l.b16 %v179
    %v280 = vunpack.c.h.b16 %v179
    %v281 = vunpack.c.l.b16 %v180
    %v282 = vunpack.c.h.b16 %v180
    %v283 = vunpack.c.l.b16 %v181
    %v284 = vunpack.c.h.b16 %v181
    %v285 = vunpack.c.l.b16 %v182
    %v286 = vunpack.c.h.b16 %v182
    %v287 = vunpack.c.l.b16 %v183
    %v288 = vunpack.c.h.b16 %v183
    %v289 = vunpack.c.l.b16 %v184
    %v290 = vunpack.c.h.b16 %v184
    %v291 = vunpack.c.l.b16 %v185
    %v292 = vunpack.c.h.b16 %v185
    %v293 = vunpack.c.l.b16 %v186
    %v294 = vunpack.c.h.b16 %v186
    %v295 = vpack.c.b16 %v233, %v231
    %v296 = vpack.c.b16 %v234, %v232
    %v297 = vpack.c.b16 %v237, %v235
    %v298 = vpack.c.b16 %v238, %v236
    %v299 = vpack.c.b16 %v241, %v239
    %v300 = vpack.c.b16 %v242, %v240
    %v301 = vpack.c.b16 %v245, %v243
    %v302 = vpack.c.b16 %v246, %v244
    %v303 = vpack.c.b16 %v249, %v247
    %v304 = vpack.c.b16 %v250, %v248
    %v305 = vpack.c.b16 %v253, %v251
    %v306 = vpack.c.b16 %v254, %v252
    %v307 = vpack.c.b16 %v257, %v255
    %v308 = vpack.c.b16 %v258, %v256
    %v309 = vpack.c.b16 %v261, %v259
    %v310 = vpack.c.b16 %v262, %v260
    %v311 = vpack.c.b16 %v265, %v263
    %v312 = vpack.c.b16 %v266, %v264
    %v313 = vpack.c.b16 %v269, %v267
    %v314 = vpack.c.b16 %v270, %v268
    %v315 = vpack.c.b16 %v273, %v271
    %v316 = vpack.c.b16 %v274, %v272
    %v317 = vpack.c.b16 %v277, %v275
    %v318 = vpack.c.b16 %v278, %v276
    %v319 = vpack.c.b16 %v281, %v279
    %v320 = vpack.c.b16 %v282, %v280
    %v321 = vpack.c.b16 %v285, %v283
    %v322 = vpack.c.b16 %v286, %v284
    %v323 = vpack.c.b16 %v289, %v287
    %v324 = vpack.c.b16 %v290, %v288
    %v325 = vpack.c.b16 %v293, %v291
    %v326 = vpack.c.b16 %v294, %v292
    %359 = vmatprep.subr.bf16.mxu0 %v296
    %360 = vmatpush1.bf16.msra.mxu0 %v295
    %361 = vmatprep.subr.bf16.mxu0 %v298
    %362 = vmatpush1.bf16.msra.mxu0 %v297
    %363 = vmatprep.subr.bf16.mxu0 %v300
    %364 = vmatpush1.bf16.msra.mxu0 %v299
    %365 = vmatprep.subr.bf16.mxu0 %v302
    %366 = vmatpush1.bf16.msra.mxu0 %v301
    %367 = vmatprep.subr.bf16.mxu0 %v304
    %368 = vmatpush1.bf16.msra.mxu0 %v303
    %369 = vmatprep.subr.bf16.mxu0 %v306
    %370 = vmatpush1.bf16.msra.mxu0 %v305
    %371 = vmatprep.subr.bf16.mxu0 %v308
    %372 = vmatpush1.bf16.msra.mxu0 %v307
    %373 = vmatprep.subr.bf16.mxu0 %v310
    %374 = vmatpush1.bf16.msra.mxu0 %v309
    %375 = vmatprep.subr.bf16.mxu0 %v312
    %376 = vmatpush1.bf16.msra.mxu0 %v311
    %377 = vmatprep.subr.bf16.mxu0 %v314
    %378 = vmatpush1.bf16.msra.mxu0 %v313
    %379 = vmatprep.subr.bf16.mxu0 %v316
    %380 = vmatpush1.bf16.msra.mxu0 %v315
    %381 = vmatprep.subr.bf16.mxu0 %v318
    %382 = vmatpush1.bf16.msra.mxu0 %v317
    %383 = vmatprep.subr.bf16.mxu0 %v320
    %384 = vmatpush1.bf16.msra.mxu0 %v319
    %385 = vmatprep.subr.bf16.mxu0 %v322
    %386 = vmatpush1.bf16.msra.mxu0 %v321
    %387 = vmatprep.subr.bf16.mxu0 %v324
    %388 = vmatpush1.bf16.msra.mxu0 %v323
    %389 = vmatprep.subr.bf16.mxu0 %v326
    %390 = vmatpush1.bf16.msra.mxu0 %v325
    %391 = vmatprep.mubr.bf16.mxu0 %v154
    %392 = vmatmul.mubr.bf16.gmra.mrb[0].mxu0 %v153
    %v393 = vpop.f32.mrb[0].mxu0
    %v394 = vadd.f32 %v192, %v393
    %v395 = vpop.f32.mrb[0].mxu0
    %v396 = vadd.f32 %v196, %v395
    %v397 = vpop.f32.mrb[0].mxu0
    %v398 = vpop.f32.mrb[0].mxu0
    %399 = vdwg.mxu0
    %v400 = vmax.f32 %v394, 0.0
    %v401 = vmax.f32 %v396, 0.0
    %v402 = vld [vmem:[%s5] sm:$0x3]
    %s403 = sld [smem:[#allocation2]]
    %v404 = vstv %s403
    %v406 = vlaneseq
    %v407 = vshrl.u32 %v406, 7
    %v408 = vsub.s32 0, %v407
    %v409 = vrot.slane %v402, %v408
    %v410 = vlaneseq
    %v411 = vshrl.u32 %v410, 7
    %v412 = vsub.s32 1, %v411
    %v413 = vrot.slane %v402, %v412
    %416 = vmatprep.subr.mxu0 %v401
    %417 = vmatpush1.xpose.msra.mxu0 %v400
    %418 = vmatprep.subr.mxu0 0.0
    %419 = vmatpush1.xpose.msra.mxu0 0.0
    %420 = vmatprep.subr.mxu0 0.0
    %421 = vmatpush1.xpose.msra.mxu0 0.0
    %422 = vmatprep.subr.mxu0 0.0
    %423 = vmatpush1.xpose.msra.mxu0 0.0
    %424 = vmatprep.subr.mxu0 0.0
    %425 = vmatpush1.xpose.msra.mxu0 0.0
    %426 = vmatprep.subr.mxu0 0.0
    %427 = vmatpush1.xpose.msra.mxu0 0.0
    %428 = vmatprep.subr.mxu0 0.0
    %429 = vmatpush1.xpose.msra.mxu0 0.0
    %430 = vmatprep.subr.mxu0 0.0
    %431 = vmatpush1.xpose.msra.mxu0 0.0
    %432 = vmatprep.subr.mxu0 0.0
    %433 = vmatpush1.xpose.msra.mxu0 0.0
    %434 = vmatprep.subr.mxu0 0.0
    %435 = vmatpush1.xpose.msra.mxu0 0.0
    %436 = vmatprep.subr.mxu0 0.0
    %437 = vmatpush1.xpose.msra.mxu0 0.0
    %438 = vmatprep.subr.mxu0 0.0
    %439 = vmatpush1.xpose.msra.mxu0 0.0
    %440 = vmatprep.subr.mxu0 0.0
    %441 = vmatpush1.xpose.msra.mxu0 0.0
    %442 = vmatprep.subr.mxu0 0.0
    %443 = vmatpush1.xpose.msra.mxu0 0.0
    %444 = vmatprep.subr.mxu0 0.0
    %445 = vmatpush1.xpose.msra.mxu0 0.0
    %446 = vmatprep.subr.mxu0 0.0
    %447 = vmatpush1.xpose.msra.mxu0 0.0
    %448 = vmatprep.subr.mxu0 0.0
    %449 = vmatpush1.xpose.msra.mxu0 0.0
    %450 = vmatprep.subr.mxu0 0.0
    %451 = vmatpush1.xpose.msra.mxu0 0.0
    %452 = vmatprep.subr.mxu0 0.0
    %453 = vmatpush1.xpose.msra.mxu0 0.0
    %454 = vmatprep.subr.mxu0 0.0
    %455 = vmatpush1.xpose.msra.mxu0 0.0
    %456 = vmatprep.subr.mxu0 0.0
    %457 = vmatpush1.xpose.msra.mxu0 0.0
    %458 = vmatprep.subr.mxu0 0.0
    %459 = vmatpush1.xpose.msra.mxu0 0.0
    %460 = vmatprep.subr.mxu0 0.0
    %461 = vmatpush1.xpose.msra.mxu0 0.0
    %462 = vmatprep.subr.mxu0 0.0
    %463 = vmatpush1.xpose.msra.mxu0 0.0
    %464 = vmatprep.subr.mxu0 0.0
    %465 = vmatpush1.xpose.msra.mxu0 0.0
    %466 = vmatprep.subr.mxu0 0.0
    %467 = vmatpush1.xpose.msra.mxu0 0.0
    %468 = vmatprep.subr.mxu0 0.0
    %469 = vmatpush1.xpose.msra.mxu0 0.0
    %470 = vmatprep.subr.mxu0 0.0
    %471 = vmatpush1.xpose.msra.mxu0 0.0
    %472 = vmatprep.subr.mxu0 0.0
    %473 = vmatpush1.xpose.msra.mxu0 0.0
    %474 = vmatprep.subr.mxu0 0.0
    %475 = vmatpush1.xpose.msra.mxu0 0.0
    %476 = vmatprep.subr.mxu0 0.0
    %477 = vmatpush1.xpose.msra.mxu0 0.0
    %478 = vmatprep.subr.mxu0 0.0
    %479 = vmatpush1.xpose.msra.mxu0 0.0
    %480 = vmatprep.mubr.f32.mxu0 %v413
    %481 = vmatmul.mubr.f32.gmra.mrb[0].mxu0 %v409
    %v482 = vpop.f32.mrb[0].mxu0
    %v483 = vadd.f32 %v404, %v482
    %v484 = vpop.f32.mrb[0].mxu0
    %485 = vdwg.mxu0
    %vm486 = vcmask 57344
    %487 = vst.msk [vmem:[#allocation9] sm:$0x1] %vm486, %v483
    // Predicated region
    $region42: #{critic_forward.1} parent=1 // pred_check
      _
    $region43: #{critic_forward.1} parent=1 // pred_check_branch
      %489 = sbr.rel (0) target = $region45
    $region44: #{critic_forward.1} parent=1 // pred_region
      %s491 = ssub.s32 16, 16
      %492 = vsyncadd [#allocation5], %s491
      %s494 = sshll.u32 [#allocation9], 4
      %s495 = int_to_ptr.vmem [resolvable:$true] %s494
      %497 = dma.vmem_to_hbm [thread:$0]  %s495, 16, %s7, [#allocation5]
    $region45: #{critic_forward.1} parent=1 // pred_fallthru
      _
    // Predicated region
    $region46: #{critic_forward.1} parent=1 // pred_check
      _
    $region47: #{critic_forward.1} parent=1 // pred_check_branch
      %499 = sbr.rel (0) target = $region49
    $region48: #{critic_forward.1} parent=1 // pred_region
      %500 = dma.done [#allocation5], 16
    $region49: #{critic_forward.1} parent=1 // pred_fallthru
      _
    %501 = vsyncpa [#allocation4], 1
    %502 = vsyncpa [#allocation7], 1
    %503 = vsyncpa [#allocation5], 1

</llo_original>
